<compile_context>
chip_gen: v7x
topology: tpu7x:2x2x1
jax: 0.10.0
libtpu: 0.0.40
codegen_flags: <defaults>
</compile_context>

<pallas_src>
import functools

import jax
import jax.numpy as jnp
from jax.experimental import pallas as pl
from jax.experimental.pallas import tpu as pltpu


def _round_up(n: int, m: int) -> int:
    return ((n + m - 1) // m) * m


def _cdiv(a: int, b: int) -> int:
    return (a + b - 1) // b


def _vae_kernel(x_ref, w1_ref, b1_ref, w2_ref, b2_ref,
                w3_ref, b3_ref, w4_ref, b4_ref, eps_ref,
                recon_ref, mu_ref):
    x = x_ref[...]  # bf16 batch tile

    # ---- encode ----
    h1 = jnp.dot(x, w1_ref[...], preferred_element_type=jnp.float32) + b1_ref[...]
    h1 = jnp.maximum(h1, 0.0)

    mu = jnp.dot(h1.astype(jnp.bfloat16), w2_ref[...],
                 preferred_element_type=jnp.float32) + b2_ref[...]
    # logvar == mu (single (W2, b2) head in the reference module)

    # ---- reparameterize (f32) ----
    z = mu + jnp.exp(0.5 * mu) * eps_ref[...]

    # ---- decode ----
    h2 = jnp.dot(z.astype(jnp.bfloat16), w3_ref[...],
                 preferred_element_type=jnp.float32) + b3_ref[...]
    h2 = jnp.maximum(h2, 0.0)
    logits = jnp.dot(h2.astype(jnp.bfloat16), w4_ref[...],
                     preferred_element_type=jnp.float32) + b4_ref[...]

    # numerically stable sigmoid: exp argument is always <= 0; divide on the EUP
    e = jnp.exp(-jnp.abs(logits))
    inv = pl.reciprocal(1.0 + e, approx=True)
    recon = jnp.where(logits >= 0, inv, e * inv)

    recon_ref[...] = recon.astype(recon_ref.dtype)
    mu_ref[...] = mu.astype(mu_ref.dtype)


def prepare_params(params):
    """Pad feature dims to multiples of 128 lanes and cast weights to bf16.

    Call ONCE per parameter set; the result is reused across vae_forward calls so
    weight padding/casting never re-runs per invocation.
    """
    input_dim, hidden_dim = params["w1"].shape
    latent_dim = params["w2"].shape[1]
    in_p = _round_up(input_dim, 128)
    hid_p = _round_up(hidden_dim, 128)
    lat_p = _round_up(latent_dim, 128)

    def padw(a, rows, cols):
        a = jnp.asarray(a, jnp.bfloat16)
        return jnp.pad(a, ((0, rows - a.shape[0]), (0, cols - a.shape[1])))

    def padb(a, cols):
        a = jnp.asarray(a, jnp.float32).reshape(1, -1)
        return jnp.pad(a, ((0, 0), (0, cols - a.shape[1])))

    return {
        "w1": padw(params["w1"], in_p, hid_p), "b1": padb(params["b1"], hid_p),
        "w2": padw(params["w2"], hid_p, lat_p), "b2": padb(params["b2"], lat_p),
        "w3": padw(params["w3"], lat_p, hid_p), "b3": padb(params["b3"], hid_p),
        "w4": padw(params["w4"], hid_p, in_p), "b4": padb(params["b4"], in_p),
    }


@functools.partial(jax.jit, static_argnames=("tile_b",))
def vae_forward(x, prepped, eps, *, tile_b: int = 256):
    """x: [B, input_dim] f32. prepped: output of prepare_params. eps: [B, latent_dim] f32.

    Returns (recon, mu, logvar) with logvar == mu (single-head reference module).
    """
    B, input_dim = x.shape
    latent_dim = eps.shape[1]
    in_p, hid_p = prepped["w1"].shape
    lat_p = prepped["w2"].shape[1]

    # --- batch tiling: multiple of 16 (bf16 sublane packing), divisor-aware to
    #     minimize padded rows, and >= 2 tiles when possible so the "parallel"
    #     axis shards across both v7x TensorCores. ---
    SUB = 16
    desired = max(SUB, min(tile_b, _round_up(B, SUB)))
    n_tiles = _cdiv(B, desired)
    if n_tiles == 1 and B > SUB:
        n_tiles = 2
    tb = _round_up(_cdiv(B, n_tiles), SUB)
    n_tiles = _cdiv(B, tb)
    Bp = tb * n_tiles

    # --- pad activations; zero padding is semantics-preserving (relu(0)=0,
    #     padded eps is 0, padded W rows/cols are 0); padded rows/cols sliced off.
    xp = jnp.pad(x.astype(jnp.bfloat16),
                 ((0, Bp - B), (0, in_p - input_dim)))
    epsp = jnp.pad(eps.astype(jnp.float32),
                   ((0, Bp - B), (0, lat_p - latent_dim)))

    # batch-tiled arrays: new tile per grid step (double-buffered by default)
    row_spec = lambda d: pl.BlockSpec((tb, d), lambda i: (i, 0))
    # weights/biases: constant block index -> fetched once, single-buffered
    full_spec = lambda shape: pl.BlockSpec(shape, lambda i: (0, 0),
                                           pipeline_mode=pl.Buffered(1))

    # --- VMEM budget (bytes): single-buffered weights/biases + double-buffered
    #     batch tiles + intermediate activations, with margin; never below the
    #     32 MiB scoped default. ---
    w_bytes = 2 * (in_p * hid_p + hid_p * lat_p + lat_p * hid_p + hid_p * in_p)
    b_bytes = 4 * 8 * (2 * hid_p + lat_p + in_p)
    tile_bytes = 2 * (tb * in_p * 2 + tb * lat_p * 4 + tb * in_p * 4 + tb * lat_p * 4)
    interm_bytes = 4 * tb * (2 * hid_p + lat_p + in_p)
    vmem_limit = int(2 * (w_bytes + b_bytes + tile_bytes + interm_bytes))
    vmem_limit = min(64 * 1024 * 1024, max(32 * 1024 * 1024, vmem_limit))

    # --- cost estimate from padded dims actually executed ---
    flops = 2 * Bp * (in_p * hid_p + hid_p * lat_p + lat_p * hid_p + hid_p * in_p)
    transcendentals = Bp * (lat_p + 2 * in_p)  # reparam exp + sigmoid exp/recip
    bytes_accessed = (xp.size * 2 + epsp.size * 4
                      + w_bytes + 4 * (2 * hid_p + lat_p + in_p)
                      + 4 * (Bp * in_p + Bp * lat_p))

    recon_p, mu_p = pl.pallas_call(
        _vae_kernel,
        grid=(n_tiles,),
        out_shape=(
            jax.ShapeDtypeStruct((Bp, in_p), jnp.float32),
            jax.ShapeDtypeStruct((Bp, lat_p), jnp.float32),
        ),
        in_specs=[
            row_spec(in_p),                  # x (bf16)
            full_spec((in_p, hid_p)),        # W1 (bf16)
            full_spec((1, hid_p)),           # b1 (f32)
            full_spec((hid_p, lat_p)),       # W2
            full_spec((1, lat_p)),           # b2
            full_spec((lat_p, hid_p)),       # W3
            full_spec((1, hid_p)),           # b3
            full_spec((hid_p, in_p)),        # W4
            full_spec((1, in_p)),            # b4
            row_spec(lat_p),                 # eps (f32)
        ],
        out_specs=(row_spec(in_p), row_spec(lat_p)),
        compiler_params=pltpu.CompilerParams(
            dimension_semantics=("parallel",),
            vmem_limit_bytes=vmem_limit,
        ),
        cost_estimate=pl.CostEstimate(
            flops=flops,
            transcendentals=transcendentals,
            bytes_accessed=bytes_accessed,
        ),
    )(xp, prepped["w1"], prepped["b1"], prepped["w2"], prepped["b2"],
      prepped["w3"], prepped["b3"], prepped["w4"], prepped["b4"], epsp)

    recon = recon_p[:B, :input_dim]
    mu = mu_p[:B, :latent_dim]
    logvar = mu  # identical to mu; not recomputed/stored in the kernel
    return recon, mu, logvar


def init_params(key, input_dim, hidden_dim, latent_dim):
    ks = jax.random.split(key, 8)
    # torch module uses plain randn; scaled here (Xavier-ish) so the self-test's
    # activations stay in a well-conditioned range for the bf16 matmul path.
    return {
        "w1": jax.random.normal(ks[0], (input_dim, hidden_dim), jnp.float32) / jnp.sqrt(input_dim),
        "b1": 0.1 * jax.random.normal(ks[1], (hidden_dim,), jnp.float32),
        "w2": jax.random.normal(ks[2], (hidden_dim, latent_dim), jnp.float32) / jnp.sqrt(hidden_dim),
        "b2": 0.1 * jax.random.normal(ks[3], (latent_dim,), jnp.float32),
        "w3": jax.random.normal(ks[4], (latent_dim, hidden_dim), jnp.float32) / jnp.sqrt(latent_dim),
        "b3": 0.1 * jax.random.normal(ks[5], (hidden_dim,), jnp.float32),
        "w4": jax.random.normal(ks[6], (hidden_dim, input_dim), jnp.float32) / jnp.sqrt(hidden_dim),
        "b4": 0.1 * jax.random.normal(ks[7], (input_dim,), jnp.float32),
    }


def _reference_forward(x, params, eps):
    h1 = jnp.maximum(x @ params["w1"] + params["b1"], 0.0)
    mu = h1 @ params["w2"] + params["b2"]
    logvar = mu
    z = mu + jnp.exp(0.5 * logvar) * eps
    h2 = jnp.maximum(z @ params["w3"] + params["b3"], 0.0)
    recon = jax.nn.sigmoid(h2 @ params["w4"] + params["b4"])
    return recon, mu, logvar


if __name__ == "__main__":
    B, input_dim, hidden_dim, latent_dim = 8, 32, 64, 16

    key = jax.random.PRNGKey(0)
    k_x, k_p, k_eps = jax.random.split(key, 3)

    x = jax.random.normal(k_x, (B, input_dim), jnp.float32)
    params = init_params(k_p, input_dim, hidden_dim, latent_dim)
    eps = jax.random.normal(k_eps, (B, latent_dim), jnp.float32)

    prepped = prepare_params(params)  # pad + cast weights once, outside the jit
    recon, mu, logvar = vae_forward(x, prepped, eps)
    jax.block_until_ready((recon, mu, logvar))

    # sanity check against a pure-JAX f32 reference (relaxed tolerance: the
    # kernel runs its matmuls with bf16 operands / f32 accumulation)
    r_ref, m_ref, lv_ref = _reference_forward(x, params, eps)
    assert recon.shape == (B, input_dim)
    assert mu.shape == (B, latent_dim) and logvar.shape == (B, latent_dim)
    assert jnp.allclose(mu, m_ref, atol=5e-2, rtol=5e-2)
    assert jnp.allclose(logvar, lv_ref, atol=5e-2, rtol=5e-2)
    assert jnp.allclose(recon, r_ref, atol=5e-2, rtol=5e-2)

    print("KERNEL_OK")
</pallas_src>

<mosaic_0001>
module attributes {stable_mosaic.version = 11 : i64} {
  func.func @_vae_kernel(%arg0: i32, %arg1: memref<16x128xbf16, #tpu.memory_space<vmem>>, %arg2: memref<128x128xbf16, #tpu.memory_space<vmem>>, %arg3: memref<1x128xf32, #tpu.memory_space<vmem>>, %arg4: memref<128x128xbf16, #tpu.memory_space<vmem>>, %arg5: memref<1x128xf32, #tpu.memory_space<vmem>>, %arg6: memref<128x128xbf16, #tpu.memory_space<vmem>>, %arg7: memref<1x128xf32, #tpu.memory_space<vmem>>, %arg8: memref<128x128xbf16, #tpu.memory_space<vmem>>, %arg9: memref<1x128xf32, #tpu.memory_space<vmem>>, %arg10: memref<16x128xf32, #tpu.memory_space<vmem>>, %arg11: memref<16x128xf32, #tpu.memory_space<vmem>>, %arg12: memref<16x128xf32, #tpu.memory_space<vmem>>) attributes {dimension_semantics = [#tpu.dimension_semantics<parallel>], iteration_bounds = array<i64: 1>, scalar_prefetch = 0 : i64, scratch_operands = 0 : i64, tpu.core_type = #tpu.core_type<tc>, window_params = [{transform_indices = @transform_0, window_bounds = array<i64: 16, 128>}, {pipeline_mode = #tpu.pipeline_mode<synchronous>, transform_indices = @transform_1, window_bounds = array<i64: 128, 128>}, {pipeline_mode = #tpu.pipeline_mode<synchronous>, transform_indices = @transform_2, window_bounds = array<i64: 1, 128>}, {pipeline_mode = #tpu.pipeline_mode<synchronous>, transform_indices = @transform_3, window_bounds = array<i64: 128, 128>}, {pipeline_mode = #tpu.pipeline_mode<synchronous>, transform_indices = @transform_4, window_bounds = array<i64: 1, 128>}, {pipeline_mode = #tpu.pipeline_mode<synchronous>, transform_indices = @transform_5, window_bounds = array<i64: 128, 128>}, {pipeline_mode = #tpu.pipeline_mode<synchronous>, transform_indices = @transform_6, window_bounds = array<i64: 1, 128>}, {pipeline_mode = #tpu.pipeline_mode<synchronous>, transform_indices = @transform_7, window_bounds = array<i64: 128, 128>}, {pipeline_mode = #tpu.pipeline_mode<synchronous>, transform_indices = @transform_8, window_bounds = array<i64: 1, 128>}, {transform_indices = @transform_9, window_bounds = array<i64: 16, 128>}, {transform_indices = @transform_10, window_bounds = array<i64: 16, 128>}, {transform_indices = @transform_11, window_bounds = array<i64: 16, 128>}]} {
    %c0 = arith.constant 0 : index
    %c0_0 = arith.constant 0 : index
    %0 = vector.load %arg1[%c0, %c0_0] : memref<16x128xbf16, #tpu.memory_space<vmem>>, vector<16x128xbf16>
    %c0_1 = arith.constant 0 : index
    %c0_2 = arith.constant 0 : index
    %1 = vector.load %arg2[%c0_1, %c0_2] : memref<128x128xbf16, #tpu.memory_space<vmem>>, vector<128x128xbf16>
    %cst = arith.constant dense<0.000000e+00> : vector<16x128xf32>
    %2 = tpu.matmul %0, %1, %cst {dimension_numbers = #tpu.dot_dimension_numbers<[1], [0], [0], [1], [0, 0, 1, 1], [], []>} : vector<16x128xbf16>, vector<128x128xbf16>, vector<16x128xf32> -> vector<16x128xf32>
    %c0_3 = arith.constant 0 : index
    %c0_4 = arith.constant 0 : index
    %3 = vector.load %arg3[%c0_3, %c0_4] : memref<1x128xf32, #tpu.memory_space<vmem>>, vector<1x128xf32>
    %4 = vector.broadcast %3 : vector<1x128xf32> to vector<16x128xf32>
    %5 = arith.addf %2, %4 : vector<16x128xf32>
    %cst_5 = arith.constant 0.000000e+00 : f32
    %6 = vector.broadcast %cst_5 : f32 to vector<16x128xf32>
    %7 = arith.maximumf %5, %6 : vector<16x128xf32>
    %8 = arith.truncf %7 : vector<16x128xf32> to vector<16x128xbf16>
    %c0_6 = arith.constant 0 : index
    %c0_7 = arith.constant 0 : index
    %9 = vector.load %arg4[%c0_6, %c0_7] : memref<128x128xbf16, #tpu.memory_space<vmem>>, vector<128x128xbf16>
    %cst_8 = arith.constant dense<0.000000e+00> : vector<16x128xf32>
    %10 = tpu.matmul %8, %9, %cst_8 {dimension_numbers = #tpu.dot_dimension_numbers<[1], [0], [0], [1], [0, 0, 1, 1], [], []>} : vector<16x128xbf16>, vector<128x128xbf16>, vector<16x128xf32> -> vector<16x128xf32>
    %c0_9 = arith.constant 0 : index
    %c0_10 = arith.constant 0 : index
    %11 = vector.load %arg5[%c0_9, %c0_10] : memref<1x128xf32, #tpu.memory_space<vmem>>, vector<1x128xf32>
    %12 = vector.broadcast %11 : vector<1x128xf32> to vector<16x128xf32>
    %13 = arith.addf %10, %12 : vector<16x128xf32>
    %cst_11 = arith.constant 5.000000e-01 : f32
    %14 = vector.broadcast %cst_11 : f32 to vector<16x128xf32>
    %15 = arith.mulf %14, %13 : vector<16x128xf32>
    %16 = math.exp %15 : vector<16x128xf32>
    %c0_12 = arith.constant 0 : index
    %c0_13 = arith.constant 0 : index
    %17 = vector.load %arg10[%c0_12, %c0_13] : memref<16x128xf32, #tpu.memory_space<vmem>>, vector<16x128xf32>
    %18 = arith.mulf %16, %17 : vector<16x128xf32>
    %19 = arith.addf %13, %18 : vector<16x128xf32>
    %20 = arith.truncf %19 : vector<16x128xf32> to vector<16x128xbf16>
    %c0_14 = arith.constant 0 : index
    %c0_15 = arith.constant 0 : index
    %21 = vector.load %arg6[%c0_14, %c0_15] : memref<128x128xbf16, #tpu.memory_space<vmem>>, vector<128x128xbf16>
    %cst_16 = arith.constant dense<0.000000e+00> : vector<16x128xf32>
    %22 = tpu.matmul %20, %21, %cst_16 {dimension_numbers = #tpu.dot_dimension_numbers<[1], [0], [0], [1], [0, 0, 1, 1], [], []>} : vector<16x128xbf16>, vector<128x128xbf16>, vector<16x128xf32> -> vector<16x128xf32>
    %c0_17 = arith.constant 0 : index
    %c0_18 = arith.constant 0 : index
    %23 = vector.load %arg7[%c0_17, %c0_18] : memref<1x128xf32, #tpu.memory_space<vmem>>, vector<1x128xf32>
    %24 = vector.broadcast %23 : vector<1x128xf32> to vector<16x128xf32>
    %25 = arith.addf %22, %24 : vector<16x128xf32>
    %cst_19 = arith.constant 0.000000e+00 : f32
    %26 = vector.broadcast %cst_19 : f32 to vector<16x128xf32>
    %27 = arith.maximumf %25, %26 : vector<16x128xf32>
    %28 = arith.truncf %27 : vector<16x128xf32> to vector<16x128xbf16>
    %c0_20 = arith.constant 0 : index
    %c0_21 = arith.constant 0 : index
    %29 = vector.load %arg8[%c0_20, %c0_21] : memref<128x128xbf16, #tpu.memory_space<vmem>>, vector<128x128xbf16>
    %cst_22 = arith.constant dense<0.000000e+00> : vector<16x128xf32>
    %30 = tpu.matmul %28, %29, %cst_22 {dimension_numbers = #tpu.dot_dimension_numbers<[1], [0], [0], [1], [0, 0, 1, 1], [], []>} : vector<16x128xbf16>, vector<128x128xbf16>, vector<16x128xf32> -> vector<16x128xf32>
    %c0_23 = arith.constant 0 : index
    %c0_24 = arith.constant 0 : index
    %31 = vector.load %arg9[%c0_23, %c0_24] : memref<1x128xf32, #tpu.memory_space<vmem>>, vector<1x128xf32>
    %32 = vector.broadcast %31 : vector<1x128xf32> to vector<16x128xf32>
    %33 = arith.addf %30, %32 : vector<16x128xf32>
    %34 = math.absf %33 : vector<16x128xf32>
    %cst_25 = arith.constant 0.000000e+00 : f32
    %35 = vector.broadcast %cst_25 : f32 to vector<16x128xf32>
    %36 = arith.subf %35, %34 : vector<16x128xf32>
    %37 = math.exp %36 : vector<16x128xf32>
    %cst_26 = arith.constant 1.000000e+00 : f32
    %38 = vector.broadcast %cst_26 : f32 to vector<16x128xf32>
    %39 = arith.addf %38, %37 : vector<16x128xf32>
    %40 = tpu.reciprocal %39 {approx = true} : vector<16x128xf32> -> vector<16x128xf32>
    %cst_27 = arith.constant 0.000000e+00 : f32
    %41 = vector.broadcast %cst_27 : f32 to vector<16x128xf32>
    %42 = arith.cmpf oge, %33, %41 : vector<16x128xf32>
    %43 = arith.mulf %37, %40 : vector<16x128xf32>
    %44 = arith.select %42, %40, %43 : vector<16x128xi1>, vector<16x128xf32>
    %c0_28 = arith.constant 0 : index
    %c0_29 = arith.constant 0 : index
    %45 = vector.load %arg11[%c0_28, %c0_29] : memref<16x128xf32, #tpu.memory_space<vmem>>, vector<16x128xf32>
    tpu.vector_store %arg11[%c0_28, %c0_29], %44 {strides = array<i32>} : memref<16x128xf32, #tpu.memory_space<vmem>>, vector<16x128xf32>,
    %c0_30 = arith.constant 0 : index
    %c0_31 = arith.constant 0 : index
    %46 = vector.load %arg12[%c0_30, %c0_31] : memref<16x128xf32, #tpu.memory_space<vmem>>, vector<16x128xf32>
    tpu.vector_store %arg12[%c0_30, %c0_31], %13 {strides = array<i32>} : memref<16x128xf32, #tpu.memory_space<vmem>>, vector<16x128xf32>,
    return
  }
  func.func @transform_0(%arg0: i32) -> (i32, i32) {
    %c0_i32 = arith.constant 0 : i32
    %c0_i32_0 = arith.constant 0 : i32
    return %arg0, %c0_i32 : i32, i32
  }
  func.func @transform_1(%arg0: i32) -> (i32, i32) {
    %c0_i32 = arith.constant 0 : i32
    %c0_i32_0 = arith.constant 0 : i32
    %c0_i32_1 = arith.constant 0 : i32
    return %c0_i32, %c0_i32_0 : i32, i32
  }
  func.func @transform_2(%arg0: i32) -> (i32, i32) {
    %c0_i32 = arith.constant 0 : i32
    %c0_i32_0 = arith.constant 0 : i32
    %c0_i32_1 = arith.constant 0 : i32
    return %c0_i32, %c0_i32_0 : i32, i32
  }
  func.func @transform_3(%arg0: i32) -> (i32, i32) {
    %c0_i32 = arith.constant 0 : i32
    %c0_i32_0 = arith.constant 0 : i32
    %c0_i32_1 = arith.constant 0 : i32
    return %c0_i32, %c0_i32_0 : i32, i32
  }
  func.func @transform_4(%arg0: i32) -> (i32, i32) {
    %c0_i32 = arith.constant 0 : i32
    %c0_i32_0 = arith.constant 0 : i32
    %c0_i32_1 = arith.constant 0 : i32
    return %c0_i32, %c0_i32_0 : i32, i32
  }
  func.func @transform_5(%arg0: i32) -> (i32, i32) {
    %c0_i32 = arith.constant 0 : i32
    %c0_i32_0 = arith.constant 0 : i32
    %c0_i32_1 = arith.constant 0 : i32
    return %c0_i32, %c0_i32_0 : i32, i32
  }
  func.func @transform_6(%arg0: i32) -> (i32, i32) {
    %c0_i32 = arith.constant 0 : i32
    %c0_i32_0 = arith.constant 0 : i32
    %c0_i32_1 = arith.constant 0 : i32
    return %c0_i32, %c0_i32_0 : i32, i32
  }
  func.func @transform_7(%arg0: i32) -> (i32, i32) {
    %c0_i32 = arith.constant 0 : i32
    %c0_i32_0 = arith.constant 0 : i32
    %c0_i32_1 = arith.constant 0 : i32
    return %c0_i32, %c0_i32_0 : i32, i32
  }
  func.func @transform_8(%arg0: i32) -> (i32, i32) {
    %c0_i32 = arith.constant 0 : i32
    %c0_i32_0 = arith.constant 0 : i32
    %c0_i32_1 = arith.constant 0 : i32
    return %c0_i32, %c0_i32_0 : i32, i32
  }
  func.func @transform_9(%arg0: i32) -> (i32, i32) {
    %c0_i32 = arith.constant 0 : i32
    %c0_i32_0 = arith.constant 0 : i32
    return %arg0, %c0_i32 : i32, i32
  }
  func.func @transform_10(%arg0: i32) -> (i32, i32) {
    %c0_i32 = arith.constant 0 : i32
    %c0_i32_0 = arith.constant 0 : i32
    return %arg0, %c0_i32 : i32, i32
  }
  func.func @transform_11(%arg0: i32) -> (i32, i32) {
    %c0_i32 = arith.constant 0 : i32
    %c0_i32_0 = arith.constant 0 : i32
    return %arg0, %c0_i32 : i32, i32
  }
}

</mosaic_0001>

<llo_original>
// kernel: vae_forward.1
$region0: #{vae_forward.1}
  #allocation0 [shape = 'u32[]', space=smem, size = 0x4, offset = 0x4, fixed_abs, tag = 'smem constant byte address 0x4 - core index']
  #allocation1 [shape = 'u32[144,128]{1,0:T(1,128)}', space=vmem, size = 0x12000, scoped, tag = 'internal scratch']
  %s0 = inlined_call_operand.vmem [shape: bf16[16,128], index: 0, kind: input, shape index: {}]
  %s1 = inlined_call_operand.vmem [shape: bf16[128,128], index: 1, kind: input, shape index: {}]
  %s2 = inlined_call_operand.hbm [shape: f32[1,128], index: 2, kind: input, shape index: {}]
  %s3 = inlined_call_operand.hbm [shape: bf16[128,128], index: 3, kind: input, shape index: {}]
  %s4 = inlined_call_operand.hbm [shape: f32[1,128], index: 4, kind: input, shape index: {}]
  %s5 = inlined_call_operand.hbm [shape: bf16[128,128], index: 5, kind: input, shape index: {}]
  %s6 = inlined_call_operand.hbm [shape: f32[1,128], index: 6, kind: input, shape index: {}]
  %s7 = inlined_call_operand.hbm [shape: bf16[128,128], index: 7, kind: input, shape index: {}]
  %s8 = inlined_call_operand.hbm [shape: f32[1,128], index: 8, kind: input, shape index: {}]
  %s9 = inlined_call_operand.vmem [shape: f32[16,128], index: 9, kind: input, shape index: {}]
  %s10 = inlined_call_operand.vmem [shape: f32[16,128], index: 10, kind: output, shape index: {0}]
  %s11 = inlined_call_operand.vmem [shape: f32[16,128], index: 11, kind: output, shape index: {1}]
  %12 = xla_tuple %s10, %s11
  %s13 = sld [smem:[#allocation0]]
  $region86: #{vae_forward.1} parent=0
    _
  %s15 = ssub.s32 1, %s13
  %s16 = scalar_select 0, %s15, %s13
  $region1: #{vae_forward.1} parent=0
    #allocation2 [shape = 'u8[512]{0}', space=vmem, size = 0x400, scoped, tag = 'input window, operand 2, single buffered']
    #allocation3 [shape = 's32[1]{0}', space=sflag, size = 0x4, scoped, tag = 'scoped memory for vae_forward.1']
    #allocation4 [shape = 'u8[32768]{0}', space=vmem, size = 0x8000, scoped, tag = 'input window, operand 3, single buffered']
    #allocation5 [shape = 's32[1]{0}', space=sflag, size = 0x4, scoped, tag = 'scoped memory for vae_forward.1']
    #allocation6 [shape = 'u8[512]{0}', space=vmem, size = 0x400, scoped, tag = 'input window, operand 4, single buffered']
    #allocation7 [shape = 'u8[32768]{0}', space=vmem, size = 0x8000, scoped, tag = 'input window, operand 5, single buffered']
    #allocation8 [shape = 's32[1]{0}', space=sflag, size = 0x4, scoped, tag = 'scoped memory for vae_forward.1']
    #allocation9 [shape = 'u8[512]{0}', space=vmem, size = 0x400, scoped, tag = 'input window, operand 6, single buffered']
    #allocation10 [shape = 'u8[32768]{0}', space=vmem, size = 0x8000, scoped, tag = 'input window, operand 7, single buffered']
    #allocation11 [shape = 's32[1]{0}', space=sflag, size = 0x4, scoped, tag = 'scoped memory for vae_forward.1']
    #allocation12 [shape = 'u8[512]{0}', space=vmem, size = 0x400, scoped, tag = 'input window, operand 8, single buffered']
    %17 = vsyncpa [#allocation3], 0
    %18 = vsyncpa [#allocation5], 0
    %19 = vsyncpa [#allocation8], 0
    %20 = vsyncpa [#allocation11], 0
    // Predicated region
    $region2: #{vae_forward.1} parent=1 // pred_check
      _
    $region3: #{vae_forward.1} parent=1 // pred_check_branch
      %22 = sbr.rel (0) target = $region5
    $region4: #{vae_forward.1} parent=1 // pred_region
      _
    $region5: #{vae_forward.1} parent=1 // pred_fallthru
      _
    // Predicated region
    $region6: #{vae_forward.1} parent=1 // pred_check
      _
    $region7: #{vae_forward.1} parent=1 // pred_check_branch
      %24 = sbr.rel (0) target = $region9
    $region8: #{vae_forward.1} parent=1 // pred_region
      _
    $region9: #{vae_forward.1} parent=1 // pred_fallthru
      _
    // Predicated region
    $region10: #{vae_forward.1} parent=1 // pred_check
      _
    $region11: #{vae_forward.1} parent=1 // pred_check_branch
      %26 = sbr.rel (0) target = $region13
    $region12: #{vae_forward.1} parent=1 // pred_region
      %s28 = ssub.s32 16, 16
      %29 = vsyncadd [#allocation3], %s28
      %s31 = sshll.u32 [#allocation2], 4
      %s32 = int_to_ptr.vmem [resolvable:$true] %s31
      %34 = dma.hbm_to_vmem [thread:$0]  %s2, 16, %s32, [#allocation3]
    $region13: #{vae_forward.1} parent=1 // pred_fallthru
      _
    // Predicated region
    $region14: #{vae_forward.1} parent=1 // pred_check
      _
    $region15: #{vae_forward.1} parent=1 // pred_check_branch
      %36 = sbr.rel (0) target = $region17
    $region16: #{vae_forward.1} parent=1 // pred_region
      %s38 = ssub.s32 1024, 1024
      %39 = vsyncadd [#allocation5], %s38
      %s40 = sshll.u32 [#allocation4], 4
      %s41 = int_to_ptr.vmem [resolvable:$true] %s40
      %46 = dma.hbm_to_vmem [thread:$0]  %s3, 1024, %s41, [#allocation5], 64, 64, 4
    $region17: #{vae_forward.1} parent=1 // pred_fallthru
      _
    // Predicated region
    $region18: #{vae_forward.1} parent=1 // pred_check
      _
    $region19: #{vae_forward.1} parent=1 // pred_check_branch
      %48 = sbr.rel (0) target = $region21
    $region20: #{vae_forward.1} parent=1 // pred_region
      %s50 = ssub.s32 16, 16
      %51 = vsyncadd [#allocation5], %s50
      %s53 = sshll.u32 [#allocation6], 4
      %s54 = int_to_ptr.vmem [resolvable:$true] %s53
      %56 = dma.hbm_to_vmem [thread:$0]  %s4, 16, %s54, [#allocation5]
    $region21: #{vae_forward.1} parent=1 // pred_fallthru
      _
    // Predicated region
    $region22: #{vae_forward.1} parent=1 // pred_check
      _
    $region23: #{vae_forward.1} parent=1 // pred_check_branch
      %58 = sbr.rel (0) target = $region25
    $region24: #{vae_forward.1} parent=1 // pred_region
      %s60 = ssub.s32 1024, 1024
      %61 = vsyncadd [#allocation8], %s60
      %s62 = sshll.u32 [#allocation7], 4
      %s63 = int_to_ptr.vmem [resolvable:$true] %s62
      %68 = dma.hbm_to_vmem [thread:$0]  %s5, 1024, %s63, [#allocation8], 64, 64, 4
    $region25: #{vae_forward.1} parent=1 // pred_fallthru
      _
    // Predicated region
    $region26: #{vae_forward.1} parent=1 // pred_check
      _
    $region27: #{vae_forward.1} parent=1 // pred_check_branch
      %70 = sbr.rel (0) target = $region29
    $region28: #{vae_forward.1} parent=1 // pred_region
      %s72 = ssub.s32 16, 16
      %73 = vsyncadd [#allocation8], %s72
      %s75 = sshll.u32 [#allocation9], 4
      %s76 = int_to_ptr.vmem [resolvable:$true] %s75
      %78 = dma.hbm_to_vmem [thread:$0]  %s6, 16, %s76, [#allocation8]
    $region29: #{vae_forward.1} parent=1 // pred_fallthru
      _
    // Predicated region
    $region30: #{vae_forward.1} parent=1 // pred_check
      _
    $region31: #{vae_forward.1} parent=1 // pred_check_branch
      %80 = sbr.rel (0) target = $region33
    $region32: #{vae_forward.1} parent=1 // pred_region
      %s82 = ssub.s32 1024, 1024
      %83 = vsyncadd [#allocation11], %s82
      %s84 = sshll.u32 [#allocation10], 4
      %s85 = int_to_ptr.vmem [resolvable:$true] %s84
      %90 = dma.hbm_to_vmem [thread:$0]  %s7, 1024, %s85, [#allocation11], 64, 64, 4
    $region33: #{vae_forward.1} parent=1 // pred_fallthru
      _
    // Predicated region
    $region34: #{vae_forward.1} parent=1 // pred_check
      _
    $region35: #{vae_forward.1} parent=1 // pred_check_branch
      %92 = sbr.rel (0) target = $region37
    $region36: #{vae_forward.1} parent=1 // pred_region
      %s94 = ssub.s32 16, 16
      %95 = vsyncadd [#allocation11], %s94
      %s97 = sshll.u32 [#allocation12], 4
      %s98 = int_to_ptr.vmem [resolvable:$true] %s97
      %100 = dma.hbm_to_vmem [thread:$0]  %s8, 16, %s98, [#allocation11]
    $region37: #{vae_forward.1} parent=1 // pred_fallthru
      _
    // Predicated region
    $region38: #{vae_forward.1} parent=1 // pred_check
      _
    $region39: #{vae_forward.1} parent=1 // pred_check_branch
      %102 = sbr.rel (0) target = $region41
    $region40: #{vae_forward.1} parent=1 // pred_region
      _
    $region41: #{vae_forward.1} parent=1 // pred_fallthru
      _
    // Predicated region
    $region42: #{vae_forward.1} parent=1 // pred_check
      _
    $region43: #{vae_forward.1} parent=1 // pred_check_branch
      %104 = sbr.rel (0) target = $region45
    $region44: #{vae_forward.1} parent=1 // pred_region
      %105 = dma.done [#allocation3], 16
    $region45: #{vae_forward.1} parent=1 // pred_fallthru
      _
    // Predicated region
    $region46: #{vae_forward.1} parent=1 // pred_check
      _
    $region47: #{vae_forward.1} parent=1 // pred_check_branch
      %107 = sbr.rel (0) target = $region49
    $region48: #{vae_forward.1} parent=1 // pred_region
      %108 = dma.done [#allocation5], 1024
    $region49: #{vae_forward.1} parent=1 // pred_fallthru
      _
    // Predicated region
    $region50: #{vae_forward.1} parent=1 // pred_check
      _
    $region51: #{vae_forward.1} parent=1 // pred_check_branch
      %110 = sbr.rel (0) target = $region53
    $region52: #{vae_forward.1} parent=1 // pred_region
      %111 = dma.done [#allocation5], 16
    $region53: #{vae_forward.1} parent=1 // pred_fallthru
      _
    // Predicated region
    $region54: #{vae_forward.1} parent=1 // pred_check
      _
    $region55: #{vae_forward.1} parent=1 // pred_check_branch
      %113 = sbr.rel (0) target = $region57
    $region56: #{vae_forward.1} parent=1 // pred_region
      %114 = dma.done [#allocation8], 1024
    $region57: #{vae_forward.1} parent=1 // pred_fallthru
      _
    // Predicated region
    $region58: #{vae_forward.1} parent=1 // pred_check
      _
    $region59: #{vae_forward.1} parent=1 // pred_check_branch
      %116 = sbr.rel (0) target = $region61
    $region60: #{vae_forward.1} parent=1 // pred_region
      %117 = dma.done [#allocation8], 16
    $region61: #{vae_forward.1} parent=1 // pred_fallthru
      _
    // Predicated region
    $region62: #{vae_forward.1} parent=1 // pred_check
      _
    $region63: #{vae_forward.1} parent=1 // pred_check_branch
      %119 = sbr.rel (0) target = $region65
    $region64: #{vae_forward.1} parent=1 // pred_region
      %120 = dma.done [#allocation11], 1024
    $region65: #{vae_forward.1} parent=1 // pred_fallthru
      _
    // Predicated region
    $region66: #{vae_forward.1} parent=1 // pred_check
      _
    $region67: #{vae_forward.1} parent=1 // pred_check_branch
      %122 = sbr.rel (0) target = $region69
    $region68: #{vae_forward.1} parent=1 // pred_region
      %123 = dma.done [#allocation11], 16
    $region69: #{vae_forward.1} parent=1 // pred_fallthru
      _
    %v125 = vld [vmem:[%s0] sm:$0xf]
    %v126 = vld [vmem:[%s0 + $0x4] sm:$0xf]
    %v127 = vld [vmem:[%s1] sm:$0xf]
    %v128 = vld [vmem:[%s1 + $0x4] sm:$0xf]
    %v129 = vld [vmem:[%s1 + $0x8] sm:$0xf]
    %v130 = vld [vmem:[%s1 + $0xc] sm:$0xf]
    %v131 = vld [vmem:[%s1 + $0x10] sm:$0xf]
    %v132 = vld [vmem:[%s1 + $0x14] sm:$0xf]
    %v133 = vld [vmem:[%s1 + $0x18] sm:$0xf]
    %v134 = vld [vmem:[%s1 + $0x1c] sm:$0xf]
    %v135 = vld [vmem:[%s1 + $0x20] sm:$0xf]
    %v136 = vld [vmem:[%s1 + $0x24] sm:$0xf]
    %v137 = vld [vmem:[%s1 + $0x28] sm:$0xf]
    %v138 = vld [vmem:[%s1 + $0x2c] sm:$0xf]
    %v139 = vld [vmem:[%s1 + $0x30] sm:$0xf]
    %v140 = vld [vmem:[%s1 + $0x34] sm:$0xf]
    %v141 = vld [vmem:[%s1 + $0x38] sm:$0xf]
    %v142 = vld [vmem:[%s1 + $0x3c] sm:$0xf]
    %v143 = vld [vmem:[#allocation2] sm:$0x1]
    %v145 = vlaneseq
    %v146 = vshrl.u32 %v145, 7
    %v147 = vsub.s32 0, %v146
    %v148 = vrot.slane %v143, %v147
    %v152 = vunpack.c.l.b16 %v125
    %v153 = vunpack.c.l.b16 %v126
    %v154 = vpack.c.b16 %v153, %v152
    %v172 = vunpack.c.l.b16 %v127
    %v173 = vunpack.c.l.b16 %v128
    %v174 = vunpack.c.l.b16 %v129
    %v175 = vunpack.c.l.b16 %v130
    %v176 = vunpack.c.l.b16 %v131
    %v177 = vunpack.c.l.b16 %v132
    %v178 = vunpack.c.l.b16 %v133
    %v179 = vunpack.c.l.b16 %v134
    %v180 = vunpack.c.l.b16 %v135
    %v181 = vunpack.c.l.b16 %v136
    %v182 = vunpack.c.l.b16 %v137
    %v183 = vunpack.c.l.b16 %v138
    %v184 = vunpack.c.l.b16 %v139
    %v185 = vunpack.c.l.b16 %v140
    %v186 = vunpack.c.l.b16 %v141
    %v187 = vunpack.c.l.b16 %v142
    %v188 = vpack.c.b16 %v173, %v172
    %v189 = vpack.c.b16 %v175, %v174
    %v190 = vpack.c.b16 %v177, %v176
    %v191 = vpack.c.b16 %v179, %v178
    %v192 = vpack.c.b16 %v181, %v180
    %v193 = vpack.c.b16 %v183, %v182
    %v194 = vpack.c.b16 %v185, %v184
    %v195 = vpack.c.b16 %v187, %v186
    %204 = vmatprep.subr.bf16.mxu0 0
    %205 = vmatpush1.bf16.msra.mxu0 %v188
    %206 = vmatprep.subr.bf16.mxu0 0
    %207 = vmatpush1.bf16.msra.mxu0 %v189
    %208 = vmatprep.subr.bf16.mxu0 0
    %209 = vmatpush1.bf16.msra.mxu0 %v190
    %210 = vmatprep.subr.bf16.mxu0 0
    %211 = vmatpush1.bf16.msra.mxu0 %v191
    %212 = vmatprep.subr.bf16.mxu0 0
    %213 = vmatpush1.bf16.msra.mxu0 %v192
    %214 = vmatprep.subr.bf16.mxu0 0
    %215 = vmatpush1.bf16.msra.mxu0 %v193
    %216 = vmatprep.subr.bf16.mxu0 0
    %217 = vmatpush1.bf16.msra.mxu0 %v194
    %218 = vmatprep.subr.bf16.mxu0 0
    %219 = vmatpush1.bf16.msra.mxu0 %v195
    %220 = vmatprep.subr.bf16.mxu0 0
    %221 = vmatpush1.bf16.msra.mxu0 0
    %222 = vmatprep.subr.bf16.mxu0 0
    %223 = vmatpush1.bf16.msra.mxu0 0
    %224 = vmatprep.subr.bf16.mxu0 0
    %225 = vmatpush1.bf16.msra.mxu0 0
    %226 = vmatprep.subr.bf16.mxu0 0
    %227 = vmatpush1.bf16.msra.mxu0 0
    %228 = vmatprep.subr.bf16.mxu0 0
    %229 = vmatpush1.bf16.msra.mxu0 0
    %230 = vmatprep.subr.bf16.mxu0 0
    %231 = vmatpush1.bf16.msra.mxu0 0
    %232 = vmatprep.subr.bf16.mxu0 0
    %233 = vmatpush1.bf16.msra.mxu0 0
    %234 = vmatprep.subr.bf16.mxu0 0
    %235 = vmatpush1.bf16.msra.mxu0 0
    %236 = vmatprep.mubr.bf16.mxu0 0
    %237 = vmatmul.mubr.bf16.gmra.mrb[0].mxu0 %v154
    %v238 = vpop.f32.mrb[0].mxu0
    %v239 = vadd.f32 %v148, %v238
    %v240 = vpop.f32.mrb[0].mxu0
    %v241 = vpop.f32.mrb[0].mxu0
    %v242 = vadd.f32 %v148, %v241
    %v243 = vpop.f32.mrb[0].mxu0
    %244 = vdwg.mxu0
    %v245 = vmax.f32 %v239, 0.0
    %v246 = vmax.f32 %v242, 0.0
    %v247 = vpack.c.bf16 %v246, %v245
    %v248 = vld [vmem:[#allocation4] sm:$0xf]
    %v249 = vld [vmem:[#allocation4 + $0x4] sm:$0xf]
    %v250 = vld [vmem:[#allocation4 + $0x8] sm:$0xf]
    %v251 = vld [vmem:[#allocation4 + $0xc] sm:$0xf]
    %v252 = vld [vmem:[#allocation4 + $0x10] sm:$0xf]
    %v253 = vld [vmem:[#allocation4 + $0x14] sm:$0xf]
    %v254 = vld [vmem:[#allocation4 + $0x18] sm:$0xf]
    %v255 = vld [vmem:[#allocation4 + $0x1c] sm:$0xf]
    %v256 = vld [vmem:[#allocation4 + $0x20] sm:$0xf]
    %v257 = vld [vmem:[#allocation4 + $0x24] sm:$0xf]
    %v258 = vld [vmem:[#allocation4 + $0x28] sm:$0xf]
    %v259 = vld [vmem:[#allocation4 + $0x2c] sm:$0xf]
    %v260 = vld [vmem:[#allocation4 + $0x30] sm:$0xf]
    %v261 = vld [vmem:[#allocation4 + $0x34] sm:$0xf]
    %v262 = vld [vmem:[#allocation4 + $0x38] sm:$0xf]
    %v263 = vld [vmem:[#allocation4 + $0x3c] sm:$0xf]
    %v264 = vld [vmem:[#allocation6] sm:$0x1]
    %v266 = vlaneseq
    %v267 = vshrl.u32 %v266, 7
    %v268 = vsub.s32 0, %v267
    %v269 = vrot.slane %v264, %v268
    %v287 = vunpack.c.l.b16 %v248
    %v288 = vunpack.c.l.b16 %v249
    %v289 = vunpack.c.l.b16 %v250
    %v290 = vunpack.c.l.b16 %v251
    %v291 = vunpack.c.l.b16 %v252
    %v292 = vunpack.c.l.b16 %v253
    %v293 = vunpack.c.l.b16 %v254
    %v294 = vunpack.c.l.b16 %v255
    %v295 = vunpack.c.l.b16 %v256
    %v296 = vunpack.c.l.b16 %v257
    %v297 = vunpack.c.l.b16 %v258
    %v298 = vunpack.c.l.b16 %v259
    %v299 = vunpack.c.l.b16 %v260
    %v300 = vunpack.c.l.b16 %v261
    %v301 = vunpack.c.l.b16 %v262
    %v302 = vunpack.c.l.b16 %v263
    %v303 = vpack.c.b16 %v288, %v287
    %v304 = vpack.c.b16 %v290, %v289
    %v305 = vpack.c.b16 %v292, %v291
    %v306 = vpack.c.b16 %v294, %v293
    %v307 = vpack.c.b16 %v296, %v295
    %v308 = vpack.c.b16 %v298, %v297
    %v309 = vpack.c.b16 %v300, %v299
    %v310 = vpack.c.b16 %v302, %v301
    %319 = vmatprep.subr.bf16.mxu0 0
    %320 = vmatpush1.bf16.msra.mxu0 %v303
    %321 = vmatprep.subr.bf16.mxu0 0
    %322 = vmatpush1.bf16.msra.mxu0 %v304
    %323 = vmatprep.subr.bf16.mxu0 0
    %324 = vmatpush1.bf16.msra.mxu0 %v305
    %325 = vmatprep.subr.bf16.mxu0 0
    %326 = vmatpush1.bf16.msra.mxu0 %v306
    %327 = vmatprep.subr.bf16.mxu0 0
    %328 = vmatpush1.bf16.msra.mxu0 %v307
    %329 = vmatprep.subr.bf16.mxu0 0
    %330 = vmatpush1.bf16.msra.mxu0 %v308
    %331 = vmatprep.subr.bf16.mxu0 0
    %332 = vmatpush1.bf16.msra.mxu0 %v309
    %333 = vmatprep.subr.bf16.mxu0 0
    %334 = vmatpush1.bf16.msra.mxu0 %v310
    %335 = vmatprep.subr.bf16.mxu0 0
    %336 = vmatpush1.bf16.msra.mxu0 0
    %337 = vmatprep.subr.bf16.mxu0 0
    %338 = vmatpush1.bf16.msra.mxu0 0
    %339 = vmatprep.subr.bf16.mxu0 0
    %340 = vmatpush1.bf16.msra.mxu0 0
    %341 = vmatprep.subr.bf16.mxu0 0
    %342 = vmatpush1.bf16.msra.mxu0 0
    %343 = vmatprep.subr.bf16.mxu0 0
    %344 = vmatpush1.bf16.msra.mxu0 0
    %345 = vmatprep.subr.bf16.mxu0 0
    %346 = vmatpush1.bf16.msra.mxu0 0
    %347 = vmatprep.subr.bf16.mxu0 0
    %348 = vmatpush1.bf16.msra.mxu0 0
    %349 = vmatprep.subr.bf16.mxu0 0
    %350 = vmatpush1.bf16.msra.mxu0 0
    %351 = vmatprep.mubr.bf16.mxu0 0
    %352 = vmatmul.mubr.bf16.gmra.mrb[0].mxu0 %v247
    %v353 = vpop.f32.mrb[0].mxu0
    %v354 = vadd.f32 %v269, %v353
    %v355 = vpop.f32.mrb[0].mxu0
    %v356 = vpop.f32.mrb[0].mxu0
    %v357 = vadd.f32 %v269, %v356
    %v358 = vpop.f32.mrb[0].mxu0
    %359 = vdwg.mxu0
    %v360 = vmul.f32 %v354, 0.5
    %v361 = vmul.f32 %v357, 0.5
    %v362 = vmul.f32 %v360, 1.442695
    %v363 = vpow.pop %v362
    %v364 = vmul.f32 %v361, 1.442695
    %v365 = vpow.pop %v364
    %v366 = vld [vmem:[%s9] sm:$0xff]
    %v367 = vld [vmem:[%s9 + $0x8] sm:$0xff]
    %v368 = vmul.f32 %v363, %v366
    %v369 = vmul.f32 %v365, %v367
    %v370 = vadd.f32 %v354, %v368
    %v371 = vadd.f32 %v357, %v369
    %v372 = vpack.c.bf16 %v371, %v370
    %v373 = vld [vmem:[#allocation7] sm:$0xf]
    %v374 = vld [vmem:[#allocation7 + $0x4] sm:$0xf]
    %v375 = vld [vmem:[#allocation7 + $0x8] sm:$0xf]
    %v376 = vld [vmem:[#allocation7 + $0xc] sm:$0xf]
    %v377 = vld [vmem:[#allocation7 + $0x10] sm:$0xf]
    %v378 = vld [vmem:[#allocation7 + $0x14] sm:$0xf]
    %v379 = vld [vmem:[#allocation7 + $0x18] sm:$0xf]
    %v380 = vld [vmem:[#allocation7 + $0x1c] sm:$0xf]
    %v381 = vld [vmem:[#allocation7 + $0x20] sm:$0xf]
    %v382 = vld [vmem:[#allocation7 + $0x24] sm:$0xf]
    %v383 = vld [vmem:[#allocation7 + $0x28] sm:$0xf]
    %v384 = vld [vmem:[#allocation7 + $0x2c] sm:$0xf]
    %v385 = vld [vmem:[#allocation7 + $0x30] sm:$0xf]
    %v386 = vld [vmem:[#allocation7 + $0x34] sm:$0xf]
    %v387 = vld [vmem:[#allocation7 + $0x38] sm:$0xf]
    %v388 = vld [vmem:[#allocation7 + $0x3c] sm:$0xf]
    %v389 = vld [vmem:[#allocation9] sm:$0x1]
    %v391 = vlaneseq
    %v392 = vshrl.u32 %v391, 7
    %v393 = vsub.s32 0, %v392
    %v394 = vrot.slane %v389, %v393
    %v412 = vunpack.c.l.b16 %v373
    %v413 = vunpack.c.l.b16 %v374
    %v414 = vunpack.c.l.b16 %v375
    %v415 = vunpack.c.l.b16 %v376
    %v416 = vunpack.c.l.b16 %v377
    %v417 = vunpack.c.l.b16 %v378
    %v418 = vunpack.c.l.b16 %v379
    %v419 = vunpack.c.l.b16 %v380
    %v420 = vunpack.c.l.b16 %v381
    %v421 = vunpack.c.l.b16 %v382
    %v422 = vunpack.c.l.b16 %v383
    %v423 = vunpack.c.l.b16 %v384
    %v424 = vunpack.c.l.b16 %v385
    %v425 = vunpack.c.l.b16 %v386
    %v426 = vunpack.c.l.b16 %v387
    %v427 = vunpack.c.l.b16 %v388
    %v428 = vpack.c.b16 %v413, %v412
    %v429 = vpack.c.b16 %v415, %v414
    %v430 = vpack.c.b16 %v417, %v416
    %v431 = vpack.c.b16 %v419, %v418
    %v432 = vpack.c.b16 %v421, %v420
    %v433 = vpack.c.b16 %v423, %v422
    %v434 = vpack.c.b16 %v425, %v424
    %v435 = vpack.c.b16 %v427, %v426
    %444 = vmatprep.subr.bf16.mxu0 0
    %445 = vmatpush1.bf16.msra.mxu0 %v428
    %446 = vmatprep.subr.bf16.mxu0 0
    %447 = vmatpush1.bf16.msra.mxu0 %v429
    %448 = vmatprep.subr.bf16.mxu0 0
    %449 = vmatpush1.bf16.msra.mxu0 %v430
    %450 = vmatprep.subr.bf16.mxu0 0
    %451 = vmatpush1.bf16.msra.mxu0 %v431
    %452 = vmatprep.subr.bf16.mxu0 0
    %453 = vmatpush1.bf16.msra.mxu0 %v432
    %454 = vmatprep.subr.bf16.mxu0 0
    %455 = vmatpush1.bf16.msra.mxu0 %v433
    %456 = vmatprep.subr.bf16.mxu0 0
    %457 = vmatpush1.bf16.msra.mxu0 %v434
    %458 = vmatprep.subr.bf16.mxu0 0
    %459 = vmatpush1.bf16.msra.mxu0 %v435
    %460 = vmatprep.subr.bf16.mxu0 0
    %461 = vmatpush1.bf16.msra.mxu0 0
    %462 = vmatprep.subr.bf16.mxu0 0
    %463 = vmatpush1.bf16.msra.mxu0 0
    %464 = vmatprep.subr.bf16.mxu0 0
    %465 = vmatpush1.bf16.msra.mxu0 0
    %466 = vmatprep.subr.bf16.mxu0 0
    %467 = vmatpush1.bf16.msra.mxu0 0
    %468 = vmatprep.subr.bf16.mxu0 0
    %469 = vmatpush1.bf16.msra.mxu0 0
    %470 = vmatprep.subr.bf16.mxu0 0
    %471 = vmatpush1.bf16.msra.mxu0 0
    %472 = vmatprep.subr.bf16.mxu0 0
    %473 = vmatpush1.bf16.msra.mxu0 0
    %474 = vmatprep.subr.bf16.mxu0 0
    %475 = vmatpush1.bf16.msra.mxu0 0
    %476 = vmatprep.mubr.bf16.mxu0 0
    %477 = vmatmul.mubr.bf16.gmra.mrb[0].mxu0 %v372
    %v478 = vpop.f32.mrb[0].mxu0
    %v479 = vadd.f32 %v394, %v478
    %v480 = vpop.f32.mrb[0].mxu0
    %v481 = vpop.f32.mrb[0].mxu0
    %v482 = vadd.f32 %v394, %v481
    %v483 = vpop.f32.mrb[0].mxu0
    %484 = vdwg.mxu0
    %v485 = vmax.f32 %v479, 0.0
    %v486 = vmax.f32 %v482, 0.0
    %v487 = vpack.c.bf16 %v486, %v485
    %v488 = vld [vmem:[#allocation10] sm:$0xf]
    %v489 = vld [vmem:[#allocation10 + $0x4] sm:$0xf]
    %v490 = vld [vmem:[#allocation10 + $0x8] sm:$0xf]
    %v491 = vld [vmem:[#allocation10 + $0xc] sm:$0xf]
    %v492 = vld [vmem:[#allocation10 + $0x10] sm:$0xf]
    %v493 = vld [vmem:[#allocation10 + $0x14] sm:$0xf]
    %v494 = vld [vmem:[#allocation10 + $0x18] sm:$0xf]
    %v495 = vld [vmem:[#allocation10 + $0x1c] sm:$0xf]
    %v496 = vld [vmem:[#allocation10 + $0x20] sm:$0xf]
    %v497 = vld [vmem:[#allocation10 + $0x24] sm:$0xf]
    %v498 = vld [vmem:[#allocation10 + $0x28] sm:$0xf]
    %v499 = vld [vmem:[#allocation10 + $0x2c] sm:$0xf]
    %v500 = vld [vmem:[#allocation10 + $0x30] sm:$0xf]
    %v501 = vld [vmem:[#allocation10 + $0x34] sm:$0xf]
    %v502 = vld [vmem:[#allocation10 + $0x38] sm:$0xf]
    %v503 = vld [vmem:[#allocation10 + $0x3c] sm:$0xf]
    %v504 = vld [vmem:[#allocation12] sm:$0x1]
    %v506 = vlaneseq
    %v507 = vshrl.u32 %v506, 7
    %v508 = vsub.s32 0, %v507
    %v509 = vrot.slane %v504, %v508
    %v527 = vunpack.c.l.b16 %v488
    %v528 = vunpack.c.l.b16 %v489
    %v529 = vunpack.c.l.b16 %v490
    %v530 = vunpack.c.l.b16 %v491
    %v531 = vunpack.c.l.b16 %v492
    %v532 = vunpack.c.l.b16 %v493
    %v533 = vunpack.c.l.b16 %v494
    %v534 = vunpack.c.l.b16 %v495
    %v535 = vunpack.c.l.b16 %v496
    %v536 = vunpack.c.l.b16 %v497
    %v537 = vunpack.c.l.b16 %v498
    %v538 = vunpack.c.l.b16 %v499
    %v539 = vunpack.c.l.b16 %v500
    %v540 = vunpack.c.l.b16 %v501
    %v541 = vunpack.c.l.b16 %v502
    %v542 = vunpack.c.l.b16 %v503
    %v543 = vpack.c.b16 %v528, %v527
    %v544 = vpack.c.b16 %v530, %v529
    %v545 = vpack.c.b16 %v532, %v531
    %v546 = vpack.c.b16 %v534, %v533
    %v547 = vpack.c.b16 %v536, %v535
    %v548 = vpack.c.b16 %v538, %v537
    %v549 = vpack.c.b16 %v540, %v539
    %v550 = vpack.c.b16 %v542, %v541
    %559 = vmatprep.subr.bf16.mxu0 0
    %560 = vmatpush1.bf16.msra.mxu0 %v543
    %561 = vmatprep.subr.bf16.mxu0 0
    %562 = vmatpush1.bf16.msra.mxu0 %v544
    %563 = vmatprep.subr.bf16.mxu0 0
    %564 = vmatpush1.bf16.msra.mxu0 %v545
    %565 = vmatprep.subr.bf16.mxu0 0
    %566 = vmatpush1.bf16.msra.mxu0 %v546
    %567 = vmatprep.subr.bf16.mxu0 0
    %568 = vmatpush1.bf16.msra.mxu0 %v547
    %569 = vmatprep.subr.bf16.mxu0 0
    %570 = vmatpush1.bf16.msra.mxu0 %v548
    %571 = vmatprep.subr.bf16.mxu0 0
    %572 = vmatpush1.bf16.msra.mxu0 %v549
    %573 = vmatprep.subr.bf16.mxu0 0
    %574 = vmatpush1.bf16.msra.mxu0 %v550
    %575 = vmatprep.subr.bf16.mxu0 0
    %576 = vmatpush1.bf16.msra.mxu0 0
    %577 = vmatprep.subr.bf16.mxu0 0
    %578 = vmatpush1.bf16.msra.mxu0 0
    %579 = vmatprep.subr.bf16.mxu0 0
    %580 = vmatpush1.bf16.msra.mxu0 0
    %581 = vmatprep.subr.bf16.mxu0 0
    %582 = vmatpush1.bf16.msra.mxu0 0
    %583 = vmatprep.subr.bf16.mxu0 0
    %584 = vmatpush1.bf16.msra.mxu0 0
    %585 = vmatprep.subr.bf16.mxu0 0
    %586 = vmatpush1.bf16.msra.mxu0 0
    %587 = vmatprep.subr.bf16.mxu0 0
    %588 = vmatpush1.bf16.msra.mxu0 0
    %589 = vmatprep.subr.bf16.mxu0 0
    %590 = vmatpush1.bf16.msra.mxu0 0
    %591 = vmatprep.mubr.bf16.mxu0 0
    %592 = vmatmul.mubr.bf16.gmra.mrb[0].mxu0 %v487
    %v593 = vpop.f32.mrb[0].mxu0
    %v594 = vadd.f32 %v509, %v593
    %v595 = vpop.f32.mrb[0].mxu0
    %v596 = vpop.f32.mrb[0].mxu0
    %v597 = vadd.f32 %v509, %v596
    %v598 = vpop.f32.mrb[0].mxu0
    %599 = vdwg.mxu0
    %v600 = vand.u32 2147483647, %v594
    %v601 = vand.u32 2147483647, %v597
    %v602 = vsub.f32 0.0, %v600
    %v603 = vsub.f32 0.0, %v601
    %v604 = vmul.f32 %v602, 1.442695
    %v605 = vpow.pop %v604
    %v606 = vmul.f32 %v603, 1.442695
    %v607 = vpow.pop %v606
    %v608 = vadd.f32 %v605, 1.0
    %v609 = vadd.f32 %v607, 1.0
    %v610 = vrcp.pop %v608
    %v611 = vrcp.pop %v609
    %vm612 = vcmp.ge.f32.partialorder %v594, 0.0
    %vm613 = vcmp.ge.f32.partialorder %v597, 0.0
    %v614 = vmul.f32 %v605, %v610
    %v615 = vmul.f32 %v607, %v611
    %v616 = vsel %vm612, %v610, %v614
    %v617 = vsel %vm613, %v611, %v615
    %618 = vst [vmem:[%s10] sm:$0xff] %v616
    %619 = vst [vmem:[%s10 + $0x8] sm:$0xff] %v617
    %620 = vst [vmem:[%s11] sm:$0xff] %v354
    %621 = vst [vmem:[%s11 + $0x8] sm:$0xff] %v357
    // Predicated region
    $region70: #{vae_forward.1} parent=1 // pred_check
      _
    $region71: #{vae_forward.1} parent=1 // pred_check_branch
      %623 = sbr.rel (0) target = $region73
    $region72: #{vae_forward.1} parent=1 // pred_region
      _
    $region73: #{vae_forward.1} parent=1 // pred_fallthru
      _
    // Predicated region
    $region74: #{vae_forward.1} parent=1 // pred_check
      _
    $region75: #{vae_forward.1} parent=1 // pred_check_branch
      %625 = sbr.rel (0) target = $region77
    $region76: #{vae_forward.1} parent=1 // pred_region
      _
    $region77: #{vae_forward.1} parent=1 // pred_fallthru
      _
    // Predicated region
    $region78: #{vae_forward.1} parent=1 // pred_check
      _
    $region79: #{vae_forward.1} parent=1 // pred_check_branch
      %627 = sbr.rel (0) target = $region81
    $region80: #{vae_forward.1} parent=1 // pred_region
      _
    $region81: #{vae_forward.1} parent=1 // pred_fallthru
      _
    // Predicated region
    $region82: #{vae_forward.1} parent=1 // pred_check
      _
    $region83: #{vae_forward.1} parent=1 // pred_check_branch
      %629 = sbr.rel (0) target = $region85
    $region84: #{vae_forward.1} parent=1 // pred_region
      _
    $region85: #{vae_forward.1} parent=1 // pred_fallthru
      _
    %630 = vsyncpa [#allocation3], 1
    %631 = vsyncpa [#allocation5], 1
    %632 = vsyncpa [#allocation8], 1
    %633 = vsyncpa [#allocation11], 1

</llo_original>
